<compile_context>
chip_gen: v7x
topology: tpu7x:2x2x1
jax: 0.10.0
libtpu: 0.0.40
codegen_flags: <defaults>
</compile_context>

<pallas_src>
import jax
import jax.numpy as jnp
from jax.experimental import pallas as pl
from jax.experimental.pallas import tpu as pltpu


def _conv1d_kernel(x_ref, w_ref, b_ref, o_ref):
    """x_ref: (tb, T, C_in); w_ref: (K, C_in, C_out); b_ref: (1, C_out) f32;
    o_ref: (tb, T, C_out)."""
    tb, t_len, c_out = o_ref.shape
    k_taps = w_ref.shape[0]
    pad = (k_taps - 1) // 2

    bias = b_ref[...]                       # (1, C_out) f32, hoisted

    @pl.loop(0, tb)
    def _(b):
        x_b = x_ref[b]                      # (T, C_in), input dtype (dynamic lead idx)
        # Centre tap seeds the f32 accumulator (no bias broadcast up front).
        acc = jnp.dot(x_b, w_ref[pad], preferred_element_type=jnp.float32)
        # Off-centre taps: rebuild the torch-style padded/shifted view of the
        # tile from two static slices (cat of a copy of the first / last P
        # timesteps), then one MXU matmul each.
        # TODO(synk): when C_in << 128/256 the K taps could be fused into a
        # single (T, K*C_in) @ (K*C_in, C_out) im2col matmul along lanes.
        for k in range(k_taps):
            s = k - pad
            if s == 0:
                continue
            if s > 0:
                xs = jnp.concatenate(
                    [x_b[s:, :], x_b[t_len - pad:t_len - pad + s, :]], axis=0)
            else:
                xs = jnp.concatenate(
                    [x_b[pad + s:pad, :], x_b[:t_len + s, :]], axis=0)
            acc = acc + jnp.dot(xs, w_ref[k], preferred_element_type=jnp.float32)
        o_ref[b] = (acc + bias).astype(o_ref.dtype)


def conv1d_extractor(x, weight, bias, *, batch_block=None, interpret=False):
    """Forward pass of Conv1dExtractor.

    Args:
      x:      [B, T, C] input.
      weight: [C_out, C_in, K] Conv1d weight (torch layout).
      bias:   [C_out] Conv1d bias.
    Returns:
      [B, T, C_out], same dtype as x.
    """
    B, T, C_in = x.shape
    C_out, C_in_w, K = weight.shape
    if C_in_w != C_in:
        raise ValueError("Conv1dExtractor expects weight C_in to match x")
    if K > 1 and K % 2 == 0:
        # Even kernel sizes do not preserve the sequence length in this module.
        raise ValueError("Conv1dExtractor kernel requires odd kernel_size")
    P = (K - 1) // 2
    # TODO(synk): kernel_size == 1 hits a `[-0:]` slicing quirk in the torch
    # module (it appends the whole sequence); we implement the intended
    # no-padding behaviour instead.

    in_isz = jnp.dtype(x.dtype).itemsize
    out_isz = in_isz

    # Weight as (K, C_in, C_out) in the *input* dtype (full-rate MXU path);
    # bias stays f32 for the accumulator epilogue.
    w_taps = jnp.transpose(weight, (2, 1, 0)).astype(x.dtype)
    b2 = bias.reshape(1, C_out).astype(jnp.float32)

    # Per-generation VMEM capacity (fallback: v7x's 64 MiB per TensorCore).
    try:
        vmem_cap = int(getattr(pltpu.get_tpu_info(), "vmem_capacity_bytes",
                               64 << 20))
    except Exception:
        vmem_cap = 64 << 20

    row_bytes = max(1, T * C_in * in_isz)
    if batch_block is None:
        tile_target = (4 << 20) if vmem_cap >= (96 << 20) else (2 << 20)
        tile_floor = 512 << 10
        min_steps = 8            # >= ~4 pipelined steps per core after megacore
        tb_cap = max(1, tile_target // row_bytes)
        tb_steps = max(1, B // min_steps)
        tb_floor = max(1, -(-tile_floor // row_bytes))   # ceil
        tb = min(B, tb_cap, max(tb_steps, min(tb_floor, tb_cap)))
        tb = min(tb, 512)        # bound the in-kernel batch loop
    else:
        tb = max(1, min(B, int(batch_block)))

    def _vmem_need(tb_):
        x_blk = tb_ * T * C_in * in_isz
        o_blk = tb_ * T * C_out * out_isz
        params = K * C_in * C_out * in_isz + C_out * 4
        temps = 2 * T * C_in * in_isz + 2 * T * C_out * 4
        return 2 * (x_blk + o_blk) + 2 * params + temps + (2 << 20)

    vmem_budget = max(16 << 20, min(int(0.45 * vmem_cap), 96 << 20))
    while tb > 1 and _vmem_need(tb) > vmem_budget:
        tb = (tb + 1) // 2
    vmem_limit = int(min(max(_vmem_need(tb) + (8 << 20), 32 << 20),
                         max(vmem_budget, 32 << 20)))

    grid = (pl.cdiv(B, tb),)     # ragged last block is fine (writes masked)

    cost = pl.CostEstimate(
        flops=2 * B * T * C_in * C_out * K + B * T * C_out,
        transcendentals=0,
        bytes_accessed=B * T * C_in * in_isz + B * T * C_out * out_isz
        + K * C_in * C_out * in_isz + C_out * 4,
    )

    return pl.pallas_call(
        _conv1d_kernel,
        out_shape=jax.ShapeDtypeStruct((B, T, C_out), x.dtype),
        grid_spec=pltpu.PrefetchScalarGridSpec(
            num_scalar_prefetch=0,
            grid=grid,
            in_specs=[
                pl.BlockSpec((tb, T, C_in), lambda i: (i, 0, 0)),
                # TODO(synk): weight/bias are grid-invariant; pl.Buffered(1)
                # would halve their reserved VMEM (skipped for compile safety).
                pl.BlockSpec((K, C_in, C_out), lambda i: (0, 0, 0)),
                pl.BlockSpec((1, C_out), lambda i: (0, 0)),
            ],
            out_specs=pl.BlockSpec((tb, T, C_out), lambda i: (i, 0, 0)),
        ),
        compiler_params=pltpu.CompilerParams(
            dimension_semantics=("parallel",),
            vmem_limit_bytes=vmem_limit,
        ),
        cost_estimate=cost,
        interpret=interpret,
    )(x, w_taps, b2)


# ------------------------- pure-JAX reference -------------------------------
def _reference_forward(x, weight, bias, kernel_size):
    P = (kernel_size - 1) // 2
    xt = jnp.transpose(x, (0, 2, 1))                        # [B, C, T]
    if P > 0:
        xp = jnp.concatenate(
            [xt[:, :, :P], xt, xt[:, :, xt.shape[-1] - P:]], axis=-1)
    else:
        xp = xt
    out = jax.lax.conv_general_dilated(
        xp.astype(jnp.float32), weight.astype(jnp.float32),
        window_strides=(1,), padding="VALID",
        dimension_numbers=("NCH", "OIH", "NCH"))
    out = out + bias.astype(jnp.float32)[None, :, None]
    return jnp.transpose(out, (0, 2, 1)).astype(x.dtype)


if __name__ == "__main__":
    key = jax.random.PRNGKey(0)
    B, T, C = 4, 16, 8                        # batch, seq len, channels
    kx, kparams = jax.random.split(key, 2)
    x = jax.random.normal(kx, (B, T, C), dtype=jnp.float32)

    for K in (3, 5):                          # exercises P=1 and P=2 boundary taps
        kw, kb = jax.random.split(jax.random.fold_in(kparams, K), 2)
        weight = 0.1 * jax.random.normal(kw, (C, C, K), dtype=jnp.float32)
        bias = 0.1 * jax.random.normal(kb, (C,), dtype=jnp.float32)

        y = conv1d_extractor(x, weight, bias)
        jax.block_until_ready(y)

        y_ref = _reference_forward(x, weight, bias, K)
        assert y.shape == y_ref.shape == (B, T, C)
        max_err = float(jnp.max(jnp.abs(y - y_ref)))
        assert jnp.allclose(y, y_ref, atol=1e-4, rtol=1e-4), (K, max_err)

    print("KERNEL_OK")
</pallas_src>

<mosaic_0001>
module attributes {stable_mosaic.version = 11 : i64} {
  func.func @_conv1d_kernel(%arg0: i32, %arg1: memref<4x16x8xf32, #tpu.memory_space<vmem>>, %arg2: memref<3x8x8xf32, #tpu.memory_space<vmem>>, %arg3: memref<1x8xf32, #tpu.memory_space<vmem>>, %arg4: memref<4x16x8xf32, #tpu.memory_space<vmem>>) attributes {dimension_semantics = [#tpu.dimension_semantics<parallel>], iteration_bounds = array<i64: 1>, scalar_prefetch = 0 : i64, scratch_operands = 0 : i64, tpu.core_type = #tpu.core_type<tc>, window_params = [{transform_indices = @transform_0, window_bounds = array<i64: 4, 16, 8>}, {pipeline_mode = #tpu.pipeline_mode<synchronous>, transform_indices = @transform_1, window_bounds = array<i64: 3, 8, 8>}, {pipeline_mode = #tpu.pipeline_mode<synchronous>, transform_indices = @transform_2, window_bounds = array<i64: 1, 8>}, {transform_indices = @transform_3, window_bounds = array<i64: 4, 16, 8>}]} {
    %c0 = arith.constant 0 : index
    %c0_0 = arith.constant 0 : index
    %0 = vector.load %arg3[%c0, %c0_0] : memref<1x8xf32, #tpu.memory_space<vmem>>, vector<1x8xf32>
    %c0_i32 = arith.constant 0 : i32
    %c4_i32 = arith.constant 4 : i32
    %1 = arith.addi %c0_i32, %c4_i32 : i32
    %c1_i32 = arith.constant 1 : i32
    scf.for %arg5 = %c0_i32 to %1 step %c1_i32  : i32 {
      %c1_i32_2 = arith.constant 1 : i32
      %2 = arith.muli %arg5, %c1_i32_2 : i32
      %c0_i32_3 = arith.constant 0 : i32
      %3 = arith.addi %c0_i32_3, %2 : i32
      %4 = arith.index_cast %3 : i32 to index
      %c0_4 = arith.constant 0 : index
      %c0_5 = arith.constant 0 : index
      %5 = vector.load %arg1[%4, %c0_4, %c0_5] : memref<4x16x8xf32, #tpu.memory_space<vmem>>, vector<1x16x8xf32>
      %6 = vector.shape_cast %5 : vector<1x16x8xf32> to vector<16x8xf32>
      %c1 = arith.constant 1 : index
      %c0_6 = arith.constant 0 : index
      %c0_7 = arith.constant 0 : index
      %7 = vector.load %arg2[%c1, %c0_6, %c0_7] : memref<3x8x8xf32, #tpu.memory_space<vmem>>, vector<1x8x8xf32>
      %8 = vector.shape_cast %7 : vector<1x8x8xf32> to vector<8x8xf32>
      %cst = arith.constant dense<0.000000e+00> : vector<16x8xf32>
      %9 = tpu.matmul %6, %8, %cst {dimension_numbers = #tpu.dot_dimension_numbers<[1], [0], [0], [1], [0, 0, 1, 1], [], []>} : vector<16x8xf32>, vector<8x8xf32>, vector<16x8xf32> -> vector<16x8xf32>
      %10 = vector.extract_strided_slice %6 {offsets = [0, 0], sizes = [1, 8], strides = [1, 1]} : vector<16x8xf32> to vector<1x8xf32>
      %11 = vector.extract_strided_slice %6 {offsets = [0, 0], sizes = [15, 8], strides = [1, 1]} : vector<16x8xf32> to vector<15x8xf32>
      %12 = tpu.concatenate %10, %11 in 0 : vector<1x8xf32>, vector<15x8xf32> -> vector<16x8xf32>
      %c0_8 = arith.constant 0 : index
      %c0_9 = arith.constant 0 : index
      %c0_10 = arith.constant 0 : index
      %13 = vector.load %arg2[%c0_8, %c0_9, %c0_10] : memref<3x8x8xf32, #tpu.memory_space<vmem>>, vector<1x8x8xf32>
      %14 = vector.shape_cast %13 : vector<1x8x8xf32> to vector<8x8xf32>
      %cst_11 = arith.constant dense<0.000000e+00> : vector<16x8xf32>
      %15 = tpu.matmul %12, %14, %cst_11 {dimension_numbers = #tpu.dot_dimension_numbers<[1], [0], [0], [1], [0, 0, 1, 1], [], []>} : vector<16x8xf32>, vector<8x8xf32>, vector<16x8xf32> -> vector<16x8xf32>
      %16 = arith.addf %9, %15 : vector<16x8xf32>
      %17 = vector.extract_strided_slice %6 {offsets = [1, 0], sizes = [15, 8], strides = [1, 1]} : vector<16x8xf32> to vector<15x8xf32>
      %18 = vector.extract_strided_slice %6 {offsets = [15, 0], sizes = [1, 8], strides = [1, 1]} : vector<16x8xf32> to vector<1x8xf32>
      %19 = tpu.concatenate %17, %18 in 0 : vector<15x8xf32>, vector<1x8xf32> -> vector<16x8xf32>
      %c2 = arith.constant 2 : index
      %c0_12 = arith.constant 0 : index
      %c0_13 = arith.constant 0 : index
      %20 = vector.load %arg2[%c2, %c0_12, %c0_13] : memref<3x8x8xf32, #tpu.memory_space<vmem>>, vector<1x8x8xf32>
      %21 = vector.shape_cast %20 : vector<1x8x8xf32> to vector<8x8xf32>
      %cst_14 = arith.constant dense<0.000000e+00> : vector<16x8xf32>
      %22 = tpu.matmul %19, %21, %cst_14 {dimension_numbers = #tpu.dot_dimension_numbers<[1], [0], [0], [1], [0, 0, 1, 1], [], []>} : vector<16x8xf32>, vector<8x8xf32>, vector<16x8xf32> -> vector<16x8xf32>
      %23 = arith.addf %16, %22 : vector<16x8xf32>
      %24 = vector.broadcast %0 : vector<1x8xf32> to vector<16x8xf32>
      %25 = arith.addf %23, %24 : vector<16x8xf32>
      %26 = arith.index_cast %3 : i32 to index
      %c0_15 = arith.constant 0 : index
      %c0_16 = arith.constant 0 : index
      %27 = vector.load %arg4[%26, %c0_15, %c0_16] : memref<4x16x8xf32, #tpu.memory_space<vmem>>, vector<1x16x8xf32>
      %28 = vector.shape_cast %27 : vector<1x16x8xf32> to vector<16x8xf32>
      %29 = vector.shape_cast %25 : vector<16x8xf32> to vector<1x16x8xf32>
      tpu.vector_store %arg4[%26, %c0_15, %c0_16], %29 {strides = array<i32>} : memref<4x16x8xf32, #tpu.memory_space<vmem>>, vector<1x16x8xf32>,
    }
    %c4_i32_1 = arith.constant 4 : i32
    return
  }
  func.func @transform_0(%arg0: i32) -> (i32, i32, i32) {
    %c0_i32 = arith.constant 0 : i32
    %c0_i32_0 = arith.constant 0 : i32
    %c0_i32_1 = arith.constant 0 : i32
    return %arg0, %c0_i32, %c0_i32_0 : i32, i32, i32
  }
  func.func @transform_1(%arg0: i32) -> (i32, i32, i32) {
    %c0_i32 = arith.constant 0 : i32
    %c0_i32_0 = arith.constant 0 : i32
    %c0_i32_1 = arith.constant 0 : i32
    %c0_i32_2 = arith.constant 0 : i32
    return %c0_i32, %c0_i32_0, %c0_i32_1 : i32, i32, i32
  }
  func.func @transform_2(%arg0: i32) -> (i32, i32) {
    %c0_i32 = arith.constant 0 : i32
    %c0_i32_0 = arith.constant 0 : i32
    %c0_i32_1 = arith.constant 0 : i32
    return %c0_i32, %c0_i32_0 : i32, i32
  }
  func.func @transform_3(%arg0: i32) -> (i32, i32, i32) {
    %c0_i32 = arith.constant 0 : i32
    %c0_i32_0 = arith.constant 0 : i32
    %c0_i32_1 = arith.constant 0 : i32
    return %arg0, %c0_i32, %c0_i32_0 : i32, i32, i32
  }
}

</mosaic_0001>

<llo_original>
// kernel: tpu_custom_call.1
$region0: #{tpu_custom_call.1}
  #allocation0 [shape = 'u32[]', space=smem, size = 0x4, offset = 0x4, fixed_abs, tag = 'smem constant byte address 0x4 - core index']
  #allocation1 [shape = 'u32[144,128]{1,0:T(1,128)}', space=vmem, size = 0x12000, scoped, tag = 'internal scratch']
  %s0 = inlined_call_operand.vmem [shape: f32[4,16,8], index: 0, kind: input, shape index: {}]
  %s1 = inlined_call_operand.vmem [shape: f32[3,8,8], index: 1, kind: input, shape index: {}]
  %s2 = inlined_call_operand.vmem [shape: f32[1,8], index: 2, kind: input, shape index: {}]
  %s3 = inlined_call_operand.vmem [shape: f32[4,16,8], index: 3, kind: output, shape index: {}]
  %s4 = sld [smem:[#allocation0]]
  $region29: #{tpu_custom_call.1} parent=0
    _
  %s6 = ssub.s32 1, %s4
  %s7 = scalar_select 0, %s6, %s4
  // Predicated region
  $region2: #{tpu_custom_call.1} parent=0 // pred_check
    _
  $region3: #{tpu_custom_call.1} parent=0 // pred_check_branch
    %9 = sbr.rel (0) target = $region5
  $region4: #{tpu_custom_call.1} parent=0 // pred_region
    _
  $region5: #{tpu_custom_call.1} parent=0 // pred_fallthru
    _
  // Predicated region
  $region6: #{tpu_custom_call.1} parent=0 // pred_check
    _
  $region7: #{tpu_custom_call.1} parent=0 // pred_check_branch
    %11 = sbr.rel (0) target = $region9
  $region8: #{tpu_custom_call.1} parent=0 // pred_region
    _
  $region9: #{tpu_custom_call.1} parent=0 // pred_fallthru
    _
  // Predicated region
  $region10: #{tpu_custom_call.1} parent=0 // pred_check
    _
  $region11: #{tpu_custom_call.1} parent=0 // pred_check_branch
    %13 = sbr.rel (0) target = $region13
  $region12: #{tpu_custom_call.1} parent=0 // pred_region
    _
  $region13: #{tpu_custom_call.1} parent=0 // pred_fallthru
    _
  %v14 = vld [vmem:[%s2] sm:$0x1]
  loop: start=0, step=1, limit=4
  $region14: #{tpu_custom_call.1} parent=0 // loop_pre_header
    _
  $region15: #{tpu_custom_call.1} parent=0 // loop_header
    %s16 = sphi 0, %s20
    %p17 = scmp.ge.s32.totalorder %s16, 4
  $region16: #{tpu_custom_call.1} parent=0 // loop_header_branch
    %19 = sbr.rel (%p17) target = $region20
  $region17: #{tpu_custom_call.1} parent=0 // loop_body
    %s21 = smul.u32 %s16, 16
    %s22 = scalar_lea.vmem %s0, %s21
    %v23 = vld [vmem:[%s22] sm:$0xff]
    %v24 = vld [vmem:[%s22 + $0x8] sm:$0xff]
    %s25 = scalar_lea.vmem %s1, 8
    %v26 = vld [vmem:[%s25] sm:$0xff]
    %vm29 = vcmask 1040384
    %v30 = vrot.slane %v23, 7
    %v31 = vrot.slane %v24, 7
    %v32 = vsel %vm29, %v30, %v31
    %v34 = vsel %vm29, %v23, %v30
    %v35 = vld [vmem:[%s1] sm:$0xff]
    %vm36 = vcmask 64512
    %v38 = vsel %vm36, %v34, 0
    %v40 = vsel %vm36, %v32, 0
    %42 = vmatprep.subr.mxu0 0.0
    %43 = vmatpush1.msra.mxu0 %v35
    %44 = vmatprep.subr.mxu0 0.0
    %45 = vmatpush1.msra.mxu0 0.0
    %46 = vmatprep.subr.mxu0 0.0
    %47 = vmatpush1.msra.mxu0 0.0
    %48 = vmatprep.subr.mxu0 0.0
    %49 = vmatpush1.msra.mxu0 0.0
    %50 = vmatprep.subr.mxu0 0.0
    %51 = vmatpush1.msra.mxu0 0.0
    %52 = vmatprep.subr.mxu0 0.0
    %53 = vmatpush1.msra.mxu0 0.0
    %54 = vmatprep.subr.mxu0 0.0
    %55 = vmatpush1.msra.mxu0 0.0
    %56 = vmatprep.subr.mxu0 0.0
    %57 = vmatpush1.msra.mxu0 0.0
    %58 = vmatprep.subr.mxu0 0.0
    %59 = vmatpush1.msra.mxu0 0.0
    %60 = vmatprep.subr.mxu0 0.0
    %61 = vmatpush1.msra.mxu0 0.0
    %62 = vmatprep.subr.mxu0 0.0
    %63 = vmatpush1.msra.mxu0 0.0
    %64 = vmatprep.subr.mxu0 0.0
    %65 = vmatpush1.msra.mxu0 0.0
    %66 = vmatprep.subr.mxu0 0.0
    %67 = vmatpush1.msra.mxu0 0.0
    %68 = vmatprep.subr.mxu0 0.0
    %69 = vmatpush1.msra.mxu0 0.0
    %70 = vmatprep.subr.mxu0 0.0
    %71 = vmatpush1.msra.mxu0 0.0
    %72 = vmatprep.subr.mxu0 0.0
    %73 = vmatpush1.msra.mxu0 0.0
    %74 = vmatprep.subr.mxu0 0.0
    %75 = vmatpush1.msra.mxu0 0.0
    %76 = vmatprep.subr.mxu0 0.0
    %77 = vmatpush1.msra.mxu0 0.0
    %78 = vmatprep.subr.mxu0 0.0
    %79 = vmatpush1.msra.mxu0 0.0
    %80 = vmatprep.subr.mxu0 0.0
    %81 = vmatpush1.msra.mxu0 0.0
    %82 = vmatprep.subr.mxu0 0.0
    %83 = vmatpush1.msra.mxu0 0.0
    %84 = vmatprep.subr.mxu0 0.0
    %85 = vmatpush1.msra.mxu0 0.0
    %86 = vmatprep.subr.mxu0 0.0
    %87 = vmatpush1.msra.mxu0 0.0
    %88 = vmatprep.subr.mxu0 0.0
    %89 = vmatpush1.msra.mxu0 0.0
    %90 = vmatprep.subr.mxu0 0.0
    %91 = vmatpush1.msra.mxu0 0.0
    %92 = vmatprep.subr.mxu0 0.0
    %93 = vmatpush1.msra.mxu0 0.0
    %94 = vmatprep.subr.mxu0 0.0
    %95 = vmatpush1.msra.mxu0 0.0
    %96 = vmatprep.subr.mxu0 0.0
    %97 = vmatpush1.msra.mxu0 0.0
    %98 = vmatprep.subr.mxu0 0.0
    %99 = vmatpush1.msra.mxu0 0.0
    %100 = vmatprep.subr.mxu0 0.0
    %101 = vmatpush1.msra.mxu0 0.0
    %102 = vmatprep.subr.mxu0 0.0
    %103 = vmatpush1.msra.mxu0 0.0
    %104 = vmatprep.subr.mxu0 0.0
    %105 = vmatpush1.msra.mxu0 0.0
    %106 = vmatprep.mubr.f32.mxu0 0.0
    %107 = vmatmul.mubr.f32.gmra.mrb[0].mxu0 %v38
    %v108 = vpop.f32.mrb[0].mxu0
    %v109 = vadd.f32 0.0, %v108
    %v110 = vpop.f32.mrb[0].mxu0
    %111 = vmatprep.mubr.f32.mxu0 0.0
    %112 = vmatmul.mubr.f32.gmra.mrb[0].mxu0 %v40
    %v113 = vpop.f32.mrb[0].mxu0
    %v114 = vadd.f32 0.0, %v113
    %v115 = vpop.f32.mrb[0].mxu0
    %116 = vdwg.mxu0
    %v117 = vsel %vm36, %v23, 0
    %v119 = vsel %vm36, %v24, 0
    %121 = vmatprep.subr.mxu0 0.0
    %122 = vmatpush1.msra.mxu0 %v26
    %123 = vmatprep.subr.mxu0 0.0
    %124 = vmatpush1.msra.mxu0 0.0
    %125 = vmatprep.subr.mxu0 0.0
    %126 = vmatpush1.msra.mxu0 0.0
    %127 = vmatprep.subr.mxu0 0.0
    %128 = vmatpush1.msra.mxu0 0.0
    %129 = vmatprep.subr.mxu0 0.0
    %130 = vmatpush1.msra.mxu0 0.0
    %131 = vmatprep.subr.mxu0 0.0
    %132 = vmatpush1.msra.mxu0 0.0
    %133 = vmatprep.subr.mxu0 0.0
    %134 = vmatpush1.msra.mxu0 0.0
    %135 = vmatprep.subr.mxu0 0.0
    %136 = vmatpush1.msra.mxu0 0.0
    %137 = vmatprep.subr.mxu0 0.0
    %138 = vmatpush1.msra.mxu0 0.0
    %139 = vmatprep.subr.mxu0 0.0
    %140 = vmatpush1.msra.mxu0 0.0
    %141 = vmatprep.subr.mxu0 0.0
    %142 = vmatpush1.msra.mxu0 0.0
    %143 = vmatprep.subr.mxu0 0.0
    %144 = vmatpush1.msra.mxu0 0.0
    %145 = vmatprep.subr.mxu0 0.0
    %146 = vmatpush1.msra.mxu0 0.0
    %147 = vmatprep.subr.mxu0 0.0
    %148 = vmatpush1.msra.mxu0 0.0
    %149 = vmatprep.subr.mxu0 0.0
    %150 = vmatpush1.msra.mxu0 0.0
    %151 = vmatprep.subr.mxu0 0.0
    %152 = vmatpush1.msra.mxu0 0.0
    %153 = vmatprep.subr.mxu0 0.0
    %154 = vmatpush1.msra.mxu0 0.0
    %155 = vmatprep.subr.mxu0 0.0
    %156 = vmatpush1.msra.mxu0 0.0
    %157 = vmatprep.subr.mxu0 0.0
    %158 = vmatpush1.msra.mxu0 0.0
    %159 = vmatprep.subr.mxu0 0.0
    %160 = vmatpush1.msra.mxu0 0.0
    %161 = vmatprep.subr.mxu0 0.0
    %162 = vmatpush1.msra.mxu0 0.0
    %163 = vmatprep.subr.mxu0 0.0
    %164 = vmatpush1.msra.mxu0 0.0
    %165 = vmatprep.subr.mxu0 0.0
    %166 = vmatpush1.msra.mxu0 0.0
    %167 = vmatprep.subr.mxu0 0.0
    %168 = vmatpush1.msra.mxu0 0.0
    %169 = vmatprep.subr.mxu0 0.0
    %170 = vmatpush1.msra.mxu0 0.0
    %171 = vmatprep.subr.mxu0 0.0
    %172 = vmatpush1.msra.mxu0 0.0
    %173 = vmatprep.subr.mxu0 0.0
    %174 = vmatpush1.msra.mxu0 0.0
    %175 = vmatprep.subr.mxu0 0.0
    %176 = vmatpush1.msra.mxu0 0.0
    %177 = vmatprep.subr.mxu0 0.0
    %178 = vmatpush1.msra.mxu0 0.0
    %179 = vmatprep.subr.mxu0 0.0
    %180 = vmatpush1.msra.mxu0 0.0
    %181 = vmatprep.subr.mxu0 0.0
    %182 = vmatpush1.msra.mxu0 0.0
    %183 = vmatprep.subr.mxu0 0.0
    %184 = vmatpush1.msra.mxu0 0.0
    %185 = vmatprep.mubr.f32.mxu0 0.0
    %186 = vmatmul.mubr.f32.gmra.mrb[0].mxu0 %v117
    %v187 = vpop.f32.mrb[0].mxu0
    %v188 = vadd.f32 %v109, %v187
    %v189 = vpop.f32.mrb[0].mxu0
    %190 = vmatprep.mubr.f32.mxu0 0.0
    %191 = vmatmul.mubr.f32.gmra.mrb[0].mxu0 %v119
    %v192 = vpop.f32.mrb[0].mxu0
    %v193 = vadd.f32 %v114, %v192
    %v194 = vpop.f32.mrb[0].mxu0
    %195 = vdwg.mxu0
    %vm196 = vcmask 1046528
    %v197 = vrot.slane %v23, 1
    %v198 = vrot.slane %v24, 1
    %v199 = vsel %vm196, %v197, %v198
    %v201 = vsel %vm196, %v198, %v24
    %s202 = scalar_lea.vmem %s1, 16
    %v203 = vld [vmem:[%s202] sm:$0xff]
    %v204 = vsel %vm36, %v199, 0
    %v207 = vsel %vm36, %v201, 0
    %209 = vmatprep.subr.mxu0 0.0
    %210 = vmatpush1.msra.mxu0 %v203
    %211 = vmatprep.subr.mxu0 0.0
    %212 = vmatpush1.msra.mxu0 0.0
    %213 = vmatprep.subr.mxu0 0.0
    %214 = vmatpush1.msra.mxu0 0.0
    %215 = vmatprep.subr.mxu0 0.0
    %216 = vmatpush1.msra.mxu0 0.0
    %217 = vmatprep.subr.mxu0 0.0
    %218 = vmatpush1.msra.mxu0 0.0
    %219 = vmatprep.subr.mxu0 0.0
    %220 = vmatpush1.msra.mxu0 0.0
    %221 = vmatprep.subr.mxu0 0.0
    %222 = vmatpush1.msra.mxu0 0.0
    %223 = vmatprep.subr.mxu0 0.0
    %224 = vmatpush1.msra.mxu0 0.0
    %225 = vmatprep.subr.mxu0 0.0
    %226 = vmatpush1.msra.mxu0 0.0
    %227 = vmatprep.subr.mxu0 0.0
    %228 = vmatpush1.msra.mxu0 0.0
    %229 = vmatprep.subr.mxu0 0.0
    %230 = vmatpush1.msra.mxu0 0.0
    %231 = vmatprep.subr.mxu0 0.0
    %232 = vmatpush1.msra.mxu0 0.0
    %233 = vmatprep.subr.mxu0 0.0
    %234 = vmatpush1.msra.mxu0 0.0
    %235 = vmatprep.subr.mxu0 0.0
    %236 = vmatpush1.msra.mxu0 0.0
    %237 = vmatprep.subr.mxu0 0.0
    %238 = vmatpush1.msra.mxu0 0.0
    %239 = vmatprep.subr.mxu0 0.0
    %240 = vmatpush1.msra.mxu0 0.0
    %241 = vmatprep.subr.mxu0 0.0
    %242 = vmatpush1.msra.mxu0 0.0
    %243 = vmatprep.subr.mxu0 0.0
    %244 = vmatpush1.msra.mxu0 0.0
    %245 = vmatprep.subr.mxu0 0.0
    %246 = vmatpush1.msra.mxu0 0.0
    %247 = vmatprep.subr.mxu0 0.0
    %248 = vmatpush1.msra.mxu0 0.0
    %249 = vmatprep.subr.mxu0 0.0
    %250 = vmatpush1.msra.mxu0 0.0
    %251 = vmatprep.subr.mxu0 0.0
    %252 = vmatpush1.msra.mxu0 0.0
    %253 = vmatprep.subr.mxu0 0.0
    %254 = vmatpush1.msra.mxu0 0.0
    %255 = vmatprep.subr.mxu0 0.0
    %256 = vmatpush1.msra.mxu0 0.0
    %257 = vmatprep.subr.mxu0 0.0
    %258 = vmatpush1.msra.mxu0 0.0
    %259 = vmatprep.subr.mxu0 0.0
    %260 = vmatpush1.msra.mxu0 0.0
    %261 = vmatprep.subr.mxu0 0.0
    %262 = vmatpush1.msra.mxu0 0.0
    %263 = vmatprep.subr.mxu0 0.0
    %264 = vmatpush1.msra.mxu0 0.0
    %265 = vmatprep.subr.mxu0 0.0
    %266 = vmatpush1.msra.mxu0 0.0
    %267 = vmatprep.subr.mxu0 0.0
    %268 = vmatpush1.msra.mxu0 0.0
    %269 = vmatprep.subr.mxu0 0.0
    %270 = vmatpush1.msra.mxu0 0.0
    %271 = vmatprep.subr.mxu0 0.0
    %272 = vmatpush1.msra.mxu0 0.0
    %273 = vmatprep.mubr.f32.mxu0 0.0
    %274 = vmatmul.mubr.f32.gmra.mrb[0].mxu0 %v204
    %v275 = vpop.f32.mrb[0].mxu0
    %v276 = vadd.f32 0.0, %v275
    %v277 = vpop.f32.mrb[0].mxu0
    %278 = vmatprep.mubr.f32.mxu0 0.0
    %279 = vmatmul.mubr.f32.gmra.mrb[0].mxu0 %v207
    %v280 = vpop.f32.mrb[0].mxu0
    %v281 = vadd.f32 0.0, %v280
    %v282 = vpop.f32.mrb[0].mxu0
    %283 = vdwg.mxu0
    %v284 = vadd.f32 %v188, %v276
    %v285 = vadd.f32 %v193, %v281
    %v287 = vlaneseq
    %v288 = vshrl.u32 %v287, 7
    %v289 = vsub.s32 0, %v288
    %v290 = vrot.slane %v14, %v289
    %v292 = vadd.f32 %v284, %v290
    %v293 = vadd.f32 %v285, %v290
    %s294 = scalar_lea.vmem %s3, %s21
    %295 = vst.msk [vmem:[%s294] sm:$0xff] %vm36, %v292
    %296 = vst.msk [vmem:[%s294 + $0x8] sm:$0xff] %vm36, %v293
  $region18: #{tpu_custom_call.1} parent=0 // loop_footer
    %s20 = sadd.s32 1, %s16
  $region19: #{tpu_custom_call.1} parent=0 // loop_footer_branch
    %15 = sbr.rel target = $region15
  $region20: #{tpu_custom_call.1} parent=0 // loop_exit
    _
  // Predicated region
  $region21: #{tpu_custom_call.1} parent=0 // pred_check
    _
  $region22: #{tpu_custom_call.1} parent=0 // pred_check_branch
    %298 = sbr.rel (0) target = $region24
  $region23: #{tpu_custom_call.1} parent=0 // pred_region
    _
  $region24: #{tpu_custom_call.1} parent=0 // pred_fallthru
    _
  // Predicated region
  $region25: #{tpu_custom_call.1} parent=0 // pred_check
    _
  $region26: #{tpu_custom_call.1} parent=0 // pred_check_branch
    %300 = sbr.rel (0) target = $region28
  $region27: #{tpu_custom_call.1} parent=0 // pred_region
    _
  $region28: #{tpu_custom_call.1} parent=0 // pred_fallthru
    _

</llo_original>
